<compile_context>
chip_gen: v7x
topology: tpu7x:2x2x1
jax: 0.10.0
libtpu: 0.0.40
codegen_flags: <defaults>
</compile_context>

<pallas_src>
import functools
import math

import jax
import jax.numpy as jnp
import numpy as np
from jax import lax
from jax.experimental import pallas as pl
from jax.experimental.pallas import tpu as pltpu

LANE = 128  # TPU vreg lane width


def _self_attention_kernel(x_ref, w_qkv_ref, b_qkv_ref, o_ref, *, scale, compute_dtype):
    """One grid step == one batch element; all operands live in VMEM.

    x_ref     : (1, S, Dp)   activations, feature dim zero-padded to Dp (lane-dense)
    w_qkv_ref : (Dp, 3*Dp)   fused [Wq | Wk | Wv], already transposed to (in, out)
    b_qkv_ref : (1, 3*Dp)    fused bias (float32)
    o_ref     : (1, S, Dp)   output (padded columns come out exactly zero)
    """
    x = x_ref[0]                           # (S, Dp)
    w = w_qkv_ref[...]                     # (Dp, 3*Dp)
    bias = b_qkv_ref[...]                  # (1, 3*Dp) f32

    # Single fused QKV projection: one wide MXU matmul instead of three skinny ones,
    # with no in-kernel weight transpose (weights arrive in (in, out) layout).
    qkv = jnp.dot(x.astype(compute_dtype), w.astype(compute_dtype),
                  preferred_element_type=jnp.float32) + bias           # (S, 3*Dp) f32

    dp = x.shape[-1]
    # Fold 1/sqrt(D) into Q (S x Dp) rather than scaling the (S, S) scores.
    q = qkv[:, 0 * dp:1 * dp] * scale
    k = qkv[:, 1 * dp:2 * dp]
    v = qkv[:, 2 * dp:3 * dp]

    # scores = Q @ K^T, expressed as a contraction over the feature axis of both operands
    # so the K "transpose" is absorbed into the MXU operand load (no XLU transpose).
    scores = lax.dot_general(
        q.astype(compute_dtype), k.astype(compute_dtype),
        dimension_numbers=(((1,), (1,)), ((), ())),
        preferred_element_type=jnp.float32)                            # (S, S) f32

    # Numerically-stable softmax, kept in f32; approx reciprocal runs on the EUP slot.
    m = jnp.max(scores, axis=-1, keepdims=True)
    p = jnp.exp(scores - m)
    attn = p * pl.reciprocal(jnp.sum(p, axis=-1, keepdims=True), approx=True)

    out = jnp.dot(attn.astype(compute_dtype), v.astype(compute_dtype),
                  preferred_element_type=jnp.float32)                  # (S, Dp)
    o_ref[0] = out.astype(o_ref.dtype)


def self_attention_pallas(x, wq, bq, wk, bk, wv, bv, *, compute_dtype=jnp.float32):
    """Pallas forward for the PyTorch SelfAttention module.

    x: (B, S, D) float32.  wq/wk/wv: (D, D) in PyTorch nn.Linear (out, in) layout.
    bq/bk/bv: (D,).  compute_dtype=jnp.float32 for exact results, jnp.bfloat16 for
    v6e/v7x MXU throughput (softmax stays in f32 either way).
    """
    B, S, D = x.shape
    # Pad the feature dim to a multiple of 128 lanes so MXU/VPU lanes are fully used and
    # the output store is unmasked (lane-dense out_spec).  Zero padding is exact: padded
    # Q/K/V columns are identically zero, so scores and the first D output columns match.
    Dp = ((D + LANE - 1) // LANE) * LANE
    pad = Dp - D

    def to_in_out(w):  # PyTorch (out, in) -> (in, out), zero-padded to (Dp, Dp)
        return jnp.pad(w.T, ((0, pad), (0, pad)))

    def pad_bias(b):
        return jnp.pad(b, (0, pad))

    # Fused QKV weight (Dp, 3*Dp) and bias (1, 3*Dp): one resident weight tile, one DMA.
    w_qkv = jnp.concatenate([to_in_out(wq), to_in_out(wk), to_in_out(wv)], axis=1)
    b_qkv = jnp.concatenate([pad_bias(bq), pad_bias(bk), pad_bias(bv)]).reshape(1, 3 * Dp)
    x_p = jnp.pad(x, ((0, 0), (0, 0), (0, pad))) if pad else x

    kernel = functools.partial(
        _self_attention_kernel,
        scale=1.0 / math.sqrt(D),          # scale uses the ORIGINAL feature dim
        compute_dtype=compute_dtype)

    # TODO(synk): for long sequences, tile the KV loop flash-attention style
    # (grid (B, S//TQ, S//TK) with online-softmax VMEM accumulators) instead of
    # materializing the (S, S) scores; re-derive tile sizes against v7x's 64 MiB VMEM.
    out_p = pl.pallas_call(
        kernel,
        out_shape=jax.ShapeDtypeStruct((B, S, Dp), x.dtype),
        grid_spec=pltpu.PrefetchScalarGridSpec(
            num_scalar_prefetch=0,
            grid=(B,),
            in_specs=[
                pl.BlockSpec((1, S, Dp), lambda b: (b, 0, 0)),     # activations for batch b
                pl.BlockSpec((Dp, 3 * Dp), lambda b: (0, 0)),      # fused QKV weight (resident)
                pl.BlockSpec((1, 3 * Dp), lambda b: (0, 0)),       # fused bias (resident)
            ],
            out_specs=pl.BlockSpec((1, S, Dp), lambda b: (b, 0, 0)),
        ),
        compiler_params=pltpu.CompilerParams(dimension_semantics=("parallel",)),
    )(x_p, w_qkv, b_qkv)

    return out_p[..., :D] if pad else out_p


def self_attention_ref(x, wq, bq, wk, bk, wv, bv):
    q = jnp.einsum("bsd,od->bso", x, wq) + bq
    k = jnp.einsum("bsd,od->bso", x, wk) + bk
    v = jnp.einsum("bsd,od->bso", x, wv) + bv
    scores = jnp.einsum("bqd,bkd->bqk", q, k) / math.sqrt(x.shape[-1])
    attn = jax.nn.softmax(scores, axis=-1)
    return jnp.einsum("bqk,bkd->bqd", attn, v)


if __name__ == "__main__":
    key = jax.random.PRNGKey(0)
    B, S, D = 2, 8, 32
    kx, kq, kbq, kk, kbk, kv, kbv = jax.random.split(key, 7)

    x = jax.random.normal(kx, (B, S, D), dtype=jnp.float32)
    # Deterministic synthetic parameters (PyTorch Linear shapes: weight (D, D), bias (D,)).
    bound = 1.0 / math.sqrt(D)
    wq = jax.random.uniform(kq, (D, D), minval=-bound, maxval=bound, dtype=jnp.float32)
    bq = jax.random.uniform(kbq, (D,), minval=-bound, maxval=bound, dtype=jnp.float32)
    wk = jax.random.uniform(kk, (D, D), minval=-bound, maxval=bound, dtype=jnp.float32)
    bk = jax.random.uniform(kbk, (D,), minval=-bound, maxval=bound, dtype=jnp.float32)
    wv = jax.random.uniform(kv, (D, D), minval=-bound, maxval=bound, dtype=jnp.float32)
    bv = jax.random.uniform(kbv, (D,), minval=-bound, maxval=bound, dtype=jnp.float32)

    ref = self_attention_ref(x, wq, bq, wk, bk, wv, bv)

    # f32 path (exact math; tolerance accounts only for the approx EUP reciprocal).
    out = jax.block_until_ready(self_attention_pallas(x, wq, bq, wk, bk, wv, bv))
    np.testing.assert_allclose(np.asarray(out), np.asarray(ref), rtol=5e-3, atol=5e-3)

    # bf16 MXU path (v6e/v7x throughput mode): f32 accumulation + f32 softmax, looser tol.
    out_bf16 = jax.block_until_ready(
        self_attention_pallas(x, wq, bq, wk, bk, wv, bv, compute_dtype=jnp.bfloat16))
    np.testing.assert_allclose(np.asarray(out_bf16), np.asarray(ref), rtol=1e-1, atol=1e-1)

    print("KERNEL_OK")
</pallas_src>

<mosaic_0001>
module attributes {stable_mosaic.version = 11 : i64} {
  func.func @_self_attention_kernel(%arg0: i32, %arg1: memref<1x8x128xf32, #tpu.memory_space<vmem>>, %arg2: memref<128x384xf32, #tpu.memory_space<vmem>>, %arg3: memref<1x384xf32, #tpu.memory_space<vmem>>, %arg4: memref<1x8x128xf32, #tpu.memory_space<vmem>>) attributes {dimension_semantics = [#tpu.dimension_semantics<parallel>], iteration_bounds = array<i64: 2>, scalar_prefetch = 0 : i64, scratch_operands = 0 : i64, tpu.core_type = #tpu.core_type<tc>, window_params = [{transform_indices = @transform_0, window_bounds = array<i64: 1, 8, 128>}, {pipeline_mode = #tpu.pipeline_mode<synchronous>, transform_indices = @transform_1, window_bounds = array<i64: 128, 384>}, {pipeline_mode = #tpu.pipeline_mode<synchronous>, transform_indices = @transform_2, window_bounds = array<i64: 1, 384>}, {transform_indices = @transform_3, window_bounds = array<i64: 1, 8, 128>}]} {
    %c0 = arith.constant 0 : index
    %c0_0 = arith.constant 0 : index
    %c0_1 = arith.constant 0 : index
    %0 = vector.load %arg1[%c0, %c0_0, %c0_1] : memref<1x8x128xf32, #tpu.memory_space<vmem>>, vector<1x8x128xf32>
    %1 = vector.shape_cast %0 : vector<1x8x128xf32> to vector<8x128xf32>
    %c0_2 = arith.constant 0 : index
    %c0_3 = arith.constant 0 : index
    %2 = vector.load %arg2[%c0_2, %c0_3] : memref<128x384xf32, #tpu.memory_space<vmem>>, vector<128x384xf32>
    %c0_4 = arith.constant 0 : index
    %c0_5 = arith.constant 0 : index
    %3 = vector.load %arg3[%c0_4, %c0_5] : memref<1x384xf32, #tpu.memory_space<vmem>>, vector<1x384xf32>
    %cst = arith.constant dense<0.000000e+00> : vector<8x384xf32>
    %4 = tpu.matmul %1, %2, %cst {dimension_numbers = #tpu.dot_dimension_numbers<[1], [0], [0], [1], [0, 0, 1, 1], [], []>} : vector<8x128xf32>, vector<128x384xf32>, vector<8x384xf32> -> vector<8x384xf32>
    %5 = vector.broadcast %3 : vector<1x384xf32> to vector<8x384xf32>
    %6 = arith.addf %4, %5 : vector<8x384xf32>
    %7 = vector.extract_strided_slice %6 {offsets = [0, 0], sizes = [8, 128], strides = [1, 1]} : vector<8x384xf32> to vector<8x128xf32>
    %cst_6 = arith.constant 0.176776692 : f32
    %8 = vector.broadcast %cst_6 : f32 to vector<8x128xf32>
    %9 = arith.mulf %7, %8 : vector<8x128xf32>
    %10 = vector.extract_strided_slice %6 {offsets = [0, 128], sizes = [8, 128], strides = [1, 1]} : vector<8x384xf32> to vector<8x128xf32>
    %11 = vector.extract_strided_slice %6 {offsets = [0, 256], sizes = [8, 128], strides = [1, 1]} : vector<8x384xf32> to vector<8x128xf32>
    %cst_7 = arith.constant dense<0.000000e+00> : vector<8x8xf32>
    %12 = tpu.matmul %9, %10, %cst_7 {dimension_numbers = #tpu.dot_dimension_numbers<[1], [1], [0], [0], [0, 0, 1, 0], [], []>} : vector<8x128xf32>, vector<8x128xf32>, vector<8x8xf32> -> vector<8x8xf32>
    %cst_8 = arith.constant dense<0xFF800000> : vector<8xf32>
    %13 = vector.multi_reduction <maximumf>, %12, %cst_8 [1] : vector<8x8xf32> to vector<8xf32>
    %14 = vector.shape_cast %13 : vector<8xf32> to vector<8x1xf32>
    %15 = vector.broadcast %14 : vector<8x1xf32> to vector<8x8xf32>
    %16 = arith.subf %12, %15 : vector<8x8xf32>
    %17 = math.exp %16 : vector<8x8xf32>
    %cst_9 = arith.constant dense<0.000000e+00> : vector<8xf32>
    %18 = vector.multi_reduction <add>, %17, %cst_9 [1] : vector<8x8xf32> to vector<8xf32>
    %19 = vector.shape_cast %18 : vector<8xf32> to vector<8x1xf32>
    %20 = tpu.reciprocal %19 {approx = true} : vector<8x1xf32> -> vector<8x1xf32>
    %21 = vector.broadcast %20 : vector<8x1xf32> to vector<8x8xf32>
    %22 = arith.mulf %17, %21 : vector<8x8xf32>
    %cst_10 = arith.constant dense<0.000000e+00> : vector<8x128xf32>
    %23 = tpu.matmul %22, %11, %cst_10 {dimension_numbers = #tpu.dot_dimension_numbers<[1], [0], [0], [1], [0, 0, 1, 1], [], []>} : vector<8x8xf32>, vector<8x128xf32>, vector<8x128xf32> -> vector<8x128xf32>
    %c0_11 = arith.constant 0 : index
    %c0_12 = arith.constant 0 : index
    %c0_13 = arith.constant 0 : index
    %24 = vector.load %arg4[%c0_11, %c0_12, %c0_13] : memref<1x8x128xf32, #tpu.memory_space<vmem>>, vector<1x8x128xf32>
    %25 = vector.shape_cast %24 : vector<1x8x128xf32> to vector<8x128xf32>
    %26 = vector.shape_cast %23 : vector<8x128xf32> to vector<1x8x128xf32>
    tpu.vector_store %arg4[%c0_11, %c0_12, %c0_13], %26 {strides = array<i32>} : memref<1x8x128xf32, #tpu.memory_space<vmem>>, vector<1x8x128xf32>,
    return
  }
  func.func @transform_0(%arg0: i32) -> (i32, i32, i32) {
    %c0_i32 = arith.constant 0 : i32
    %c0_i32_0 = arith.constant 0 : i32
    %c0_i32_1 = arith.constant 0 : i32
    return %arg0, %c0_i32, %c0_i32_0 : i32, i32, i32
  }
  func.func @transform_1(%arg0: i32) -> (i32, i32) {
    %c0_i32 = arith.constant 0 : i32
    %c0_i32_0 = arith.constant 0 : i32
    %c0_i32_1 = arith.constant 0 : i32
    return %c0_i32, %c0_i32_0 : i32, i32
  }
  func.func @transform_2(%arg0: i32) -> (i32, i32) {
    %c0_i32 = arith.constant 0 : i32
    %c0_i32_0 = arith.constant 0 : i32
    %c0_i32_1 = arith.constant 0 : i32
    return %c0_i32, %c0_i32_0 : i32, i32
  }
  func.func @transform_3(%arg0: i32) -> (i32, i32, i32) {
    %c0_i32 = arith.constant 0 : i32
    %c0_i32_0 = arith.constant 0 : i32
    %c0_i32_1 = arith.constant 0 : i32
    return %arg0, %c0_i32, %c0_i32_0 : i32, i32, i32
  }
}

</mosaic_0001>

<llo_original>
// kernel: tpu_custom_call.1
$region0: #{tpu_custom_call.1}
  #allocation0 [shape = 'u32[]', space=smem, size = 0x4, offset = 0x4, fixed_abs, tag = 'smem constant byte address 0x4 - core index']
  #allocation1 [shape = 'u32[144,128]{1,0:T(1,128)}', space=vmem, size = 0x12000, scoped, tag = 'internal scratch']
  %s0 = inlined_call_operand.hbm [shape: f32[2,8,128], index: 0, kind: input, shape index: {}]
  %s1 = inlined_call_operand.hbm [shape: f32[128,384], index: 1, kind: input, shape index: {}]
  %s2 = inlined_call_operand.vmem [shape: f32[1,384], index: 2, kind: input, shape index: {}]
  %s3 = inlined_call_operand.hbm [shape: f32[2,8,128], index: 3, kind: output, shape index: {}]
  %s4 = sld [smem:[#allocation0]]
  $region53: #{tpu_custom_call.1} parent=0
    _
  %s6 = ssub.s32 1, %s4
  %s7 = scalar_select 0, %s6, %s4
  $region1: #{tpu_custom_call.1} parent=0
    #allocation2 [shape = 'u8[8192]{0}', space=vmem, size = 0x2000, scoped, tag = 'input window, operand 0']
    #allocation3 [shape = 's32[2]{0}', space=sflag, size = 0x8, scoped, tag = 'scoped memory for tpu_custom_call.1']
    #allocation4 [shape = 's32[2]{0}', space=sflag, size = 0x8, scoped, tag = 'scoped memory for tpu_custom_call.1']
    #allocation5 [shape = 'u8[196608]{0}', space=vmem, size = 0x30000, scoped, tag = 'input window, operand 1, single buffered']
    #allocation6 [shape = 's32[1]{0}', space=sflag, size = 0x4, scoped, tag = 'scoped memory for tpu_custom_call.1']
    #allocation7 [shape = 'u8[8192]{0}', space=vmem, size = 0x2000, scoped, tag = 'output window, operand 0']
    %8 = vsyncpa [#allocation3], 0
    %s9 = scalar_lea.sflag [#allocation3], 1
    %10 = vsyncpa %s9, 0
    %11 = vsyncpa [#allocation6], 0
    %12 = vsyncpa [#allocation4], 0
    %s13 = scalar_lea.sflag [#allocation4], 1
    %14 = vsyncpa %s13, 0
    loop: start=0, step=1, limit=4
    $region2: #{tpu_custom_call.1} parent=1 // loop_pre_header
      _
    $region3: #{tpu_custom_call.1} parent=1 // loop_header
      %s16 = sphi 0, %s20
      %p17 = scmp.ge.s32.totalorder %s16, 4
      %s26 = sphi 0, %s28
      %s29 = sphi 0, %s26
      %s30 = sphi 0, %s29
      %s46 = sphi 0, %s30
      %s50 = sphi 0, %s50
      %s52 = sphi 0, %s50
      %s53 = sphi 0, %s52
      %s67 = sphi 0, %s53
      %s71 = sphi 0, %s71
      %s73 = sphi 0, %s71
      %s74 = sphi 0, %s73
      %s88 = sphi 0, %s74
      %s94 = sphi 0, %s96
      %s97 = sphi 0, %s94
      %s98 = sphi 0, %s97
      %s114 = sphi 0, %s98
    $region4: #{tpu_custom_call.1} parent=1 // loop_header_branch
      %19 = sbr.rel (%p17) target = $region8
    $region5: #{tpu_custom_call.1} parent=1 // loop_body
      %s21 = ssub.s32 %s16, 1
      %s22 = ssub.s32 %s16, 2
      %s23 = sadd.s32 %s16, 1
      %s24 = ssub.s32 %s16, %s23
      %p25 = scmp.eq.s32.totalorder %s24, 0
      %s27 = sadd.s32 %s26, 1
      %s28 = scalar_select %p25, %s26, %s27
      %p31 = pneg %p25
      %p32 = scmp.eq.s32.totalorder %s16, 1
      %p33 = por %p31, %p32
      %p34 = scmp.ne.s32.totalorder %s26, %s29
      %p35 = scmp.eq.s32.totalorder %s16, 0
      %p36 = por %p34, %p35
      %p37 = scmp.ne.s32.totalorder %s26, %s29
      %p38 = scmp.eq.s32.totalorder %s21, 1
      %p39 = por %p37, %p38
      %p40 = scmp.ne.s32.totalorder %s29, %s30
      %p41 = scmp.eq.s32.totalorder %s21, 0
      %p42 = por %p40, %p41
      %p43 = scmp.ne.s32.totalorder %s29, %s30
      %p44 = scmp.eq.s32.totalorder %s22, 1
      %p45 = por %p43, %p44
      %p47 = scmp.ne.s32.totalorder %s30, %s46
      %p48 = scmp.eq.s32.totalorder %s22, 0
      %p49 = por %p47, %p48
      %s51 = sadd.s32 %s50, 1
      %p54 = scmp.eq.s32.totalorder %s16, 1
      %p55 = scmp.ne.s32.totalorder %s50, %s52
      %p56 = scmp.eq.s32.totalorder %s16, 0
      %p57 = por %p55, %p56
      %p58 = scmp.ne.s32.totalorder %s50, %s52
      %p59 = scmp.eq.s32.totalorder %s21, 1
      %p60 = por %p58, %p59
      %p61 = scmp.ne.s32.totalorder %s52, %s53
      %p62 = scmp.eq.s32.totalorder %s21, 0
      %p63 = por %p61, %p62
      %p64 = scmp.ne.s32.totalorder %s52, %s53
      %p65 = scmp.eq.s32.totalorder %s22, 1
      %p66 = por %p64, %p65
      %p68 = scmp.ne.s32.totalorder %s53, %s67
      %p69 = scmp.eq.s32.totalorder %s22, 0
      %p70 = por %p68, %p69
      %s72 = sadd.s32 %s71, 1
      %p75 = scmp.eq.s32.totalorder %s16, 1
      %p76 = scmp.ne.s32.totalorder %s71, %s73
      %p77 = scmp.eq.s32.totalorder %s16, 0
      %p78 = por %p76, %p77
      %p79 = scmp.ne.s32.totalorder %s71, %s73
      %p80 = scmp.eq.s32.totalorder %s21, 1
      %p81 = por %p79, %p80
      %p82 = scmp.ne.s32.totalorder %s73, %s74
      %p83 = scmp.eq.s32.totalorder %s21, 0
      %p84 = por %p82, %p83
      %p85 = scmp.ne.s32.totalorder %s73, %s74
      %p86 = scmp.eq.s32.totalorder %s22, 1
      %p87 = por %p85, %p86
      %p89 = scmp.ne.s32.totalorder %s74, %s88
      %p90 = scmp.eq.s32.totalorder %s22, 0
      %p91 = por %p89, %p90
      %s92 = ssub.s32 %s16, %s23
      %p93 = scmp.eq.s32.totalorder %s92, 0
      %s95 = sadd.s32 %s94, 1
      %s96 = scalar_select %p93, %s94, %s95
      %p99 = pneg %p93
      %p100 = scmp.eq.s32.totalorder %s16, 1
      %p101 = por %p99, %p100
      %p102 = scmp.ne.s32.totalorder %s94, %s97
      %p103 = scmp.eq.s32.totalorder %s16, 0
      %p104 = por %p102, %p103
      %p105 = scmp.ne.s32.totalorder %s94, %s97
      %p106 = scmp.eq.s32.totalorder %s21, 1
      %p107 = por %p105, %p106
      %p108 = scmp.ne.s32.totalorder %s97, %s98
      %p109 = scmp.eq.s32.totalorder %s21, 0
      %p110 = por %p108, %p109
      %p111 = scmp.ne.s32.totalorder %s97, %s98
      %p112 = scmp.eq.s32.totalorder %s22, 1
      %p113 = por %p111, %p112
      %p115 = scmp.ne.s32.totalorder %s98, %s114
      %p116 = scmp.eq.s32.totalorder %s22, 0
      %p117 = por %p115, %p116
      %p118 = scmp.le.s32.totalorder 1, %s16
      %p119 = scmp.lt.s32.totalorder %s16, 3
      %p120 = pnand %p118, %p119
      %p121 = pneg %p120
      // Predicated region
      $region9: #{tpu_custom_call.1} parent=5 // pred_check
        _
      $region10: #{tpu_custom_call.1} parent=5 // pred_check_branch
        %123 = sbr.rel (%p120) target = $region12
      $region11: #{tpu_custom_call.1} parent=5 // pred_region
        %s124 = ssub.s32 %s16, 1
        // Predicated region
        $region13: #{tpu_custom_call.1} parent=11 // pred_check
          %p125 = pneg %p63
        $region14: #{tpu_custom_call.1} parent=11 // pred_check_branch
          %127 = sbr.rel (%p125) target = $region16
        $region15: #{tpu_custom_call.1} parent=11 // pred_region
          %s129 = ssub.s32 6144, 6144
          %130 = vsyncadd [#allocation6], %s129
          %s131 = sshll.u32 [#allocation5], 4
          %s132 = int_to_ptr.vmem [resolvable:$true] %s131
          %137 = dma.hbm_to_vmem [thread:$0]  %s1, 6144, %s132, [#allocation6], 384, 384, 24
        $region16: #{tpu_custom_call.1} parent=11 // pred_fallthru
          _
        // Predicated region
        $region17: #{tpu_custom_call.1} parent=11 // pred_check
          %p138 = pneg %p84
        $region18: #{tpu_custom_call.1} parent=11 // pred_check_branch
          %140 = sbr.rel (%p138) target = $region20
        $region19: #{tpu_custom_call.1} parent=11 // pred_region
          _
        $region20: #{tpu_custom_call.1} parent=11 // pred_fallthru
          _
      $region12: #{tpu_custom_call.1} parent=5 // pred_fallthru
        _
      %p141 = scmp.lt.s32.totalorder %s16, 2
      // Predicated region
      $region21: #{tpu_custom_call.1} parent=5 // pred_check
        %p142 = pneg %p141
      $region22: #{tpu_custom_call.1} parent=5 // pred_check_branch
        %144 = sbr.rel (%p142) target = $region24
      $region23: #{tpu_custom_call.1} parent=5 // pred_region
        // Predicated region
        $region25: #{tpu_custom_call.1} parent=23 // pred_check
          %p145 = pneg %p36
        $region26: #{tpu_custom_call.1} parent=23 // pred_check_branch
          %147 = sbr.rel (%p145) target = $region28
        $region27: #{tpu_custom_call.1} parent=23 // pred_region
          %s148 = sand.u32 %s26, 1
          %s149 = scalar_lea.sflag [#allocation3], %s148
          %s150 = sand.u32 %s26, 1
          %s151 = smul.addr %s150, 8
          %s152 = scalar_lea.vmem [#allocation2], %s151
          %s154 = ssub.s32 128, 128
          %155 = vsyncadd %s149, %s154
          %s156 = smul.addr %s16, 128
          %s157 = scalar_lea.hbm %s0, %s156
          %s159 = sshll.u32 %s152, 4
          %s160 = int_to_ptr.vmem [resolvable:$true] %s159
          %162 = dma.hbm_to_vmem [thread:$0]  %s157, 128, %s160, %s149
        $region28: #{tpu_custom_call.1} parent=23 // pred_fallthru
          _
      $region24: #{tpu_custom_call.1} parent=5 // pred_fallthru
        _
      %p163 = scmp.le.s32.totalorder 1, %s16
      %p164 = scmp.lt.s32.totalorder %s16, 3
      %p165 = pnand %p163, %p164
      %p166 = pneg %p165
      // Predicated region
      $region29: #{tpu_custom_call.1} parent=5 // pred_check
        _
      $region30: #{tpu_custom_call.1} parent=5 // pred_check_branch
        %168 = sbr.rel (%p165) target = $region32
      $region31: #{tpu_custom_call.1} parent=5 // pred_region
        %s169 = ssub.s32 %s16, 1
        %s170 = sand.u32 %s29, 1
        %s171 = scalar_lea.sflag [#allocation3], %s170
        %s172 = sand.u32 %s29, 1
        %s173 = smul.addr %s172, 8
        %s174 = scalar_lea.vmem [#allocation2], %s173
        // Predicated region
        $region33: #{tpu_custom_call.1} parent=31 // pred_check
          %p175 = pneg %p42
        $region34: #{tpu_custom_call.1} parent=31 // pred_check_branch
          %177 = sbr.rel (%p175) target = $region36
        $region35: #{tpu_custom_call.1} parent=31 // pred_region
          %178 = dma.done %s171, 128
        $region36: #{tpu_custom_call.1} parent=31 // pred_fallthru
          _
        // Predicated region
        $region37: #{tpu_custom_call.1} parent=31 // pred_check
          %p179 = pneg %p63
        $region38: #{tpu_custom_call.1} parent=31 // pred_check_branch
          %181 = sbr.rel (%p179) target = $region40
        $region39: #{tpu_custom_call.1} parent=31 // pred_region
          %182 = dma.done [#allocation6], 6144
        $region40: #{tpu_custom_call.1} parent=31 // pred_fallthru
          _
        %s183 = sand.u32 %s29, 1
        %s184 = scalar_lea.sflag [#allocation3], %s183
        %s185 = sand.u32 %s29, 1
        %s186 = smul.addr %s185, 8
        %s187 = scalar_lea.vmem [#allocation2], %s186
        %p188 = pneg %p42
        %p189 = pneg %p39
        %p190 = pneg %p63
        %p191 = pneg %p60
        %p192 = pneg %p84
        %p193 = pneg %p81
        %p194 = pneg %p110
        %p195 = pneg %p107
        %s196 = sand.u32 %s97, 1
        %s197 = scalar_lea.sflag [#allocation4], %s196
        %s198 = sand.u32 %s97, 1
        %s199 = smul.addr %s198, 8
        %s200 = scalar_lea.vmem [#allocation7], %s199
        %v201 = vld [vmem:[%s174] sm:$0xff]
        %v202 = vld [vmem:[#allocation5] sm:$0xff]
        %v203 = vld [vmem:[#allocation5 + $0x8] sm:$0xff]
        %v204 = vld [vmem:[#allocation5 + $0x10] sm:$0xff]
        %v205 = vld [vmem:[#allocation5 + $0x18] sm:$0xff]
        %v206 = vld [vmem:[#allocation5 + $0x20] sm:$0xff]
        %v207 = vld [vmem:[#allocation5 + $0x28] sm:$0xff]
        %v208 = vld [vmem:[#allocation5 + $0x30] sm:$0xff]
        %v209 = vld [vmem:[#allocation5 + $0x38] sm:$0xff]
        %v210 = vld [vmem:[#allocation5 + $0x40] sm:$0xff]
        %v211 = vld [vmem:[#allocation5 + $0x48] sm:$0xff]
        %v212 = vld [vmem:[#allocation5 + $0x50] sm:$0xff]
        %v213 = vld [vmem:[#allocation5 + $0x58] sm:$0xff]
        %v214 = vld [vmem:[#allocation5 + $0x60] sm:$0xff]
        %v215 = vld [vmem:[#allocation5 + $0x68] sm:$0xff]
        %v216 = vld [vmem:[#allocation5 + $0x70] sm:$0xff]
        %v217 = vld [vmem:[#allocation5 + $0x78] sm:$0xff]
        %v218 = vld [vmem:[#allocation5 + $0x80] sm:$0xff]
        %v219 = vld [vmem:[#allocation5 + $0x88] sm:$0xff]
        %v220 = vld [vmem:[#allocation5 + $0x90] sm:$0xff]
        %v221 = vld [vmem:[#allocation5 + $0x98] sm:$0xff]
        %v222 = vld [vmem:[#allocation5 + $0xa0] sm:$0xff]
        %v223 = vld [vmem:[#allocation5 + $0xa8] sm:$0xff]
        %v224 = vld [vmem:[#allocation5 + $0xb0] sm:$0xff]
        %v225 = vld [vmem:[#allocation5 + $0xb8] sm:$0xff]
        %v226 = vld [vmem:[#allocation5 + $0xc0] sm:$0xff]
        %v227 = vld [vmem:[#allocation5 + $0xc8] sm:$0xff]
        %v228 = vld [vmem:[#allocation5 + $0xd0] sm:$0xff]
        %v229 = vld [vmem:[#allocation5 + $0xd8] sm:$0xff]
        %v230 = vld [vmem:[#allocation5 + $0xe0] sm:$0xff]
        %v231 = vld [vmem:[#allocation5 + $0xe8] sm:$0xff]
        %v232 = vld [vmem:[#allocation5 + $0xf0] sm:$0xff]
        %v233 = vld [vmem:[#allocation5 + $0xf8] sm:$0xff]
        %v234 = vld [vmem:[#allocation5 + $0x100] sm:$0xff]
        %v235 = vld [vmem:[#allocation5 + $0x108] sm:$0xff]
        %v236 = vld [vmem:[#allocation5 + $0x110] sm:$0xff]
        %v237 = vld [vmem:[#allocation5 + $0x118] sm:$0xff]
        %v238 = vld [vmem:[#allocation5 + $0x120] sm:$0xff]
        %v239 = vld [vmem:[#allocation5 + $0x128] sm:$0xff]
        %v240 = vld [vmem:[#allocation5 + $0x130] sm:$0xff]
        %v241 = vld [vmem:[#allocation5 + $0x138] sm:$0xff]
        %v242 = vld [vmem:[#allocation5 + $0x140] sm:$0xff]
        %v243 = vld [vmem:[#allocation5 + $0x148] sm:$0xff]
        %v244 = vld [vmem:[#allocation5 + $0x150] sm:$0xff]
        %v245 = vld [vmem:[#allocation5 + $0x158] sm:$0xff]
        %v246 = vld [vmem:[#allocation5 + $0x160] sm:$0xff]
        %v247 = vld [vmem:[#allocation5 + $0x168] sm:$0xff]
        %v248 = vld [vmem:[#allocation5 + $0x170] sm:$0xff]
        %v249 = vld [vmem:[#allocation5 + $0x178] sm:$0xff]
        %v250 = vld [vmem:[%s2] sm:$0x7]
        %v252 = vlaneseq
        %v253 = vshrl.u32 %v252, 7
        %v254 = vsub.s32 0, %v253
        %v255 = vrot.slane %v250, %v254
        %v256 = vlaneseq
        %v257 = vshrl.u32 %v256, 7
        %v258 = vsub.s32 1, %v257
        %v259 = vrot.slane %v250, %v258
        %v260 = vlaneseq
        %v261 = vshrl.u32 %v260, 7
        %v262 = vsub.s32 2, %v261
        %v263 = vrot.slane %v250, %v262
        %267 = vmatprep.subr.mxu0 %v203
        %268 = vmatpush1.msra.mxu0 %v202
        %269 = vmatprep.subr.mxu0 %v206
        %270 = vmatpush1.msra.mxu0 %v205
        %271 = vmatprep.subr.mxu0 %v209
        %272 = vmatpush1.msra.mxu0 %v208
        %273 = vmatprep.subr.mxu0 %v212
        %274 = vmatpush1.msra.mxu0 %v211
        %275 = vmatprep.subr.mxu0 %v215
        %276 = vmatpush1.msra.mxu0 %v214
        %277 = vmatprep.subr.mxu0 %v218
        %278 = vmatpush1.msra.mxu0 %v217
        %279 = vmatprep.subr.mxu0 %v221
        %280 = vmatpush1.msra.mxu0 %v220
        %281 = vmatprep.subr.mxu0 %v224
        %282 = vmatpush1.msra.mxu0 %v223
        %283 = vmatprep.subr.mxu0 %v227
        %284 = vmatpush1.msra.mxu0 %v226
        %285 = vmatprep.subr.mxu0 %v230
        %286 = vmatpush1.msra.mxu0 %v229
        %287 = vmatprep.subr.mxu0 %v233
        %288 = vmatpush1.msra.mxu0 %v232
        %289 = vmatprep.subr.mxu0 %v236
        %290 = vmatpush1.msra.mxu0 %v235
        %291 = vmatprep.subr.mxu0 %v239
        %292 = vmatpush1.msra.mxu0 %v238
        %293 = vmatprep.subr.mxu0 %v242
        %294 = vmatpush1.msra.mxu0 %v241
        %295 = vmatprep.subr.mxu0 %v245
        %296 = vmatpush1.msra.mxu0 %v244
        %297 = vmatprep.subr.mxu0 %v248
        %298 = vmatpush1.msra.mxu0 %v247
        %299 = vmatprep.subr.mxu0 0.0
        %300 = vmatpush1.msra.mxu0 0.0
        %301 = vmatprep.subr.mxu0 0.0
        %302 = vmatpush1.msra.mxu0 0.0
        %303 = vmatprep.subr.mxu0 0.0
        %304 = vmatpush1.msra.mxu0 0.0
        %305 = vmatprep.subr.mxu0 0.0
        %306 = vmatpush1.msra.mxu0 0.0
        %307 = vmatprep.subr.mxu0 0.0
        %308 = vmatpush1.msra.mxu0 0.0
        %309 = vmatprep.subr.mxu0 0.0
        %310 = vmatpush1.msra.mxu0 0.0
        %311 = vmatprep.subr.mxu0 0.0
        %312 = vmatpush1.msra.mxu0 0.0
        %313 = vmatprep.subr.mxu0 0.0
        %314 = vmatpush1.msra.mxu0 0.0
        %315 = vmatprep.subr.mxu0 0.0
        %316 = vmatpush1.msra.mxu0 0.0
        %317 = vmatprep.subr.mxu0 0.0
        %318 = vmatpush1.msra.mxu0 0.0
        %319 = vmatprep.subr.mxu0 0.0
        %320 = vmatpush1.msra.mxu0 0.0
        %321 = vmatprep.subr.mxu0 0.0
        %322 = vmatpush1.msra.mxu0 0.0
        %323 = vmatprep.subr.mxu0 0.0
        %324 = vmatpush1.msra.mxu0 0.0
        %325 = vmatprep.subr.mxu0 0.0
        %326 = vmatpush1.msra.mxu0 0.0
        %327 = vmatprep.subr.mxu0 0.0
        %328 = vmatpush1.msra.mxu0 0.0
        %329 = vmatprep.subr.mxu0 0.0
        %330 = vmatpush1.msra.mxu0 0.0
        %331 = vmatprep.mubr.f32.mxu0 0.0
        %332 = vmatmul.mubr.f32.gmra.mrb[0].mxu0 %v201
        %v333 = vpop.f32.mrb[0].mxu0
        %v334 = vadd.f32 %v255, %v333
        %v335 = vpop.f32.mrb[0].mxu0
        %v336 = vadd.f32 %v259, %v335
        %337 = vdwg.mxu0
        %338 = vmatprep.subr.mxu0 0.0
        %339 = vmatpush1.msra.mxu0 %v204
        %340 = vmatprep.subr.mxu0 0.0
        %341 = vmatpush1.msra.mxu0 %v207
        %342 = vmatprep.subr.mxu0 0.0
        %343 = vmatpush1.msra.mxu0 %v210
        %344 = vmatprep.subr.mxu0 0.0
        %345 = vmatpush1.msra.mxu0 %v213
        %346 = vmatprep.subr.mxu0 0.0
        %347 = vmatpush1.msra.mxu0 %v216
        %348 = vmatprep.subr.mxu0 0.0
        %349 = vmatpush1.msra.mxu0 %v219
        %350 = vmatprep.subr.mxu0 0.0
        %351 = vmatpush1.msra.mxu0 %v222
        %352 = vmatprep.subr.mxu0 0.0
        %353 = vmatpush1.msra.mxu0 %v225
        %354 = vmatprep.subr.mxu0 0.0
        %355 = vmatpush1.msra.mxu0 %v228
        %356 = vmatprep.subr.mxu0 0.0
        %357 = vmatpush1.msra.mxu0 %v231
        %358 = vmatprep.subr.mxu0 0.0
        %359 = vmatpush1.msra.mxu0 %v234
        %360 = vmatprep.subr.mxu0 0.0
        %361 = vmatpush1.msra.mxu0 %v237
        %362 = vmatprep.subr.mxu0 0.0
        %363 = vmatpush1.msra.mxu0 %v240
        %364 = vmatprep.subr.mxu0 0.0
        %365 = vmatpush1.msra.mxu0 %v243
        %366 = vmatprep.subr.mxu0 0.0
        %367 = vmatpush1.msra.mxu0 %v246
        %368 = vmatprep.subr.mxu0 0.0
        %369 = vmatpush1.msra.mxu0 %v249
        %370 = vmatprep.subr.mxu0 0.0
        %371 = vmatpush1.msra.mxu0 0.0
        %372 = vmatprep.subr.mxu0 0.0
        %373 = vmatpush1.msra.mxu0 0.0
        %374 = vmatprep.subr.mxu0 0.0
        %375 = vmatpush1.msra.mxu0 0.0
        %376 = vmatprep.subr.mxu0 0.0
        %377 = vmatpush1.msra.mxu0 0.0
        %378 = vmatprep.subr.mxu0 0.0
        %379 = vmatpush1.msra.mxu0 0.0
        %380 = vmatprep.subr.mxu0 0.0
        %381 = vmatpush1.msra.mxu0 0.0
        %382 = vmatprep.subr.mxu0 0.0
        %383 = vmatpush1.msra.mxu0 0.0
        %384 = vmatprep.subr.mxu0 0.0
        %385 = vmatpush1.msra.mxu0 0.0
        %386 = vmatprep.subr.mxu0 0.0
        %387 = vmatpush1.msra.mxu0 0.0
        %388 = vmatprep.subr.mxu0 0.0
        %389 = vmatpush1.msra.mxu0 0.0
        %390 = vmatprep.subr.mxu0 0.0
        %391 = vmatpush1.msra.mxu0 0.0
        %392 = vmatprep.subr.mxu0 0.0
        %393 = vmatpush1.msra.mxu0 0.0
        %394 = vmatprep.subr.mxu0 0.0
        %395 = vmatpush1.msra.mxu0 0.0
        %396 = vmatprep.subr.mxu0 0.0
        %397 = vmatpush1.msra.mxu0 0.0
        %398 = vmatprep.subr.mxu0 0.0
        %399 = vmatpush1.msra.mxu0 0.0
        %400 = vmatprep.subr.mxu0 0.0
        %401 = vmatpush1.msra.mxu0 0.0
        %402 = vmatprep.mubr.f32.mxu0 0.0
        %403 = vmatmul.mubr.f32.gmra.mrb[0].mxu0 %v201
        %v404 = vpop.f32.mrb[0].mxu0
        %v405 = vadd.f32 %v263, %v404
        %v406 = vpop.f32.mrb[0].mxu0
        %407 = vdwg.mxu0
        %v408 = vmul.f32 %v334, 0.17677669
        %409 = vmatprep.subr.mxu0 0.0
        %410 = vmatpush1.xpose.msra.mxu0 %v336
        %411 = vmatprep.subr.mxu0 0.0
        %412 = vmatpush1.xpose.msra.mxu0 0.0
        %413 = vmatprep.subr.mxu0 0.0
        %414 = vmatpush1.xpose.msra.mxu0 0.0
        %415 = vmatprep.subr.mxu0 0.0
        %416 = vmatpush1.xpose.msra.mxu0 0.0
        %417 = vmatprep.subr.mxu0 0.0
        %418 = vmatpush1.xpose.msra.mxu0 0.0
        %419 = vmatprep.subr.mxu0 0.0
        %420 = vmatpush1.xpose.msra.mxu0 0.0
        %421 = vmatprep.subr.mxu0 0.0
        %422 = vmatpush1.xpose.msra.mxu0 0.0
        %423 = vmatprep.subr.mxu0 0.0
        %424 = vmatpush1.xpose.msra.mxu0 0.0
        %425 = vmatprep.subr.mxu0 0.0
        %426 = vmatpush1.xpose.msra.mxu0 0.0
        %427 = vmatprep.subr.mxu0 0.0
        %428 = vmatpush1.xpose.msra.mxu0 0.0
        %429 = vmatprep.subr.mxu0 0.0
        %430 = vmatpush1.xpose.msra.mxu0 0.0
        %431 = vmatprep.subr.mxu0 0.0
        %432 = vmatpush1.xpose.msra.mxu0 0.0
        %433 = vmatprep.subr.mxu0 0.0
        %434 = vmatpush1.xpose.msra.mxu0 0.0
        %435 = vmatprep.subr.mxu0 0.0
        %436 = vmatpush1.xpose.msra.mxu0 0.0
        %437 = vmatprep.subr.mxu0 0.0
        %438 = vmatpush1.xpose.msra.mxu0 0.0
        %439 = vmatprep.subr.mxu0 0.0
        %440 = vmatpush1.xpose.msra.mxu0 0.0
        %441 = vmatprep.subr.mxu0 0.0
        %442 = vmatpush1.xpose.msra.mxu0 0.0
        %443 = vmatprep.subr.mxu0 0.0
        %444 = vmatpush1.xpose.msra.mxu0 0.0
        %445 = vmatprep.subr.mxu0 0.0
        %446 = vmatpush1.xpose.msra.mxu0 0.0
        %447 = vmatprep.subr.mxu0 0.0
        %448 = vmatpush1.xpose.msra.mxu0 0.0
        %449 = vmatprep.subr.mxu0 0.0
        %450 = vmatpush1.xpose.msra.mxu0 0.0
        %451 = vmatprep.subr.mxu0 0.0
        %452 = vmatpush1.xpose.msra.mxu0 0.0
        %453 = vmatprep.subr.mxu0 0.0
        %454 = vmatpush1.xpose.msra.mxu0 0.0
        %455 = vmatprep.subr.mxu0 0.0
        %456 = vmatpush1.xpose.msra.mxu0 0.0
        %457 = vmatprep.subr.mxu0 0.0
        %458 = vmatpush1.xpose.msra.mxu0 0.0
        %459 = vmatprep.subr.mxu0 0.0
        %460 = vmatpush1.xpose.msra.mxu0 0.0
        %461 = vmatprep.subr.mxu0 0.0
        %462 = vmatpush1.xpose.msra.mxu0 0.0
        %463 = vmatprep.subr.mxu0 0.0
        %464 = vmatpush1.xpose.msra.mxu0 0.0
        %465 = vmatprep.subr.mxu0 0.0
        %466 = vmatpush1.xpose.msra.mxu0 0.0
        %467 = vmatprep.subr.mxu0 0.0
        %468 = vmatpush1.xpose.msra.mxu0 0.0
        %469 = vmatprep.subr.mxu0 0.0
        %470 = vmatpush1.xpose.msra.mxu0 0.0
        %471 = vmatprep.subr.mxu0 0.0
        %472 = vmatpush1.xpose.msra.mxu0 0.0
        %473 = vmatprep.mubr.f32.mxu0 0.0
        %474 = vmatmul.mubr.f32.gmra.mrb[0].mxu0 %v408
        %v475 = vpop.f32.mrb[0].mxu0
        %v476 = vadd.f32 0.0, %v475
        %v477 = vpop.f32.mrb[0].mxu0
        %478 = vdwg.mxu0
        %vm479 = vcmask 64512
        %v480 = vsel %vm479, %v476, -inf
        %481 = vmax.xlane.f32.xlu0 %v480
        %v482 = vpop.xlane.xlu0 %481
        %v483 = vsub.f32 %v476, %v482
        %v484 = vmul.f32 %v483, 1.442695
        %v485 = vpow.pop %v484
        %v486 = vsel %vm479, %v485, 0.0
        %487 = vadd.xlane.f32.xlu0 %v486
        %v488 = vpop.xlane.xlu0 %487
        %v489 = vrcp.pop %v488
        %v490 = vmul.f32 %v485, %v489
        %v492 = vsel %vm479, %v490, 0
        %494 = vmatprep.subr.mxu0 0.0
        %495 = vmatpush1.msra.mxu0 %v405
        %496 = vmatprep.subr.mxu0 0.0
        %497 = vmatpush1.msra.mxu0 0.0
        %498 = vmatprep.subr.mxu0 0.0
        %499 = vmatpush1.msra.mxu0 0.0
        %500 = vmatprep.subr.mxu0 0.0
        %501 = vmatpush1.msra.mxu0 0.0
        %502 = vmatprep.subr.mxu0 0.0
        %503 = vmatpush1.msra.mxu0 0.0
        %504 = vmatprep.subr.mxu0 0.0
        %505 = vmatpush1.msra.mxu0 0.0
        %506 = vmatprep.subr.mxu0 0.0
        %507 = vmatpush1.msra.mxu0 0.0
        %508 = vmatprep.subr.mxu0 0.0
        %509 = vmatpush1.msra.mxu0 0.0
        %510 = vmatprep.subr.mxu0 0.0
        %511 = vmatpush1.msra.mxu0 0.0
        %512 = vmatprep.subr.mxu0 0.0
        %513 = vmatpush1.msra.mxu0 0.0
        %514 = vmatprep.subr.mxu0 0.0
        %515 = vmatpush1.msra.mxu0 0.0
        %516 = vmatprep.subr.mxu0 0.0
        %517 = vmatpush1.msra.mxu0 0.0
        %518 = vmatprep.subr.mxu0 0.0
        %519 = vmatpush1.msra.mxu0 0.0
        %520 = vmatprep.subr.mxu0 0.0
        %521 = vmatpush1.msra.mxu0 0.0
        %522 = vmatprep.subr.mxu0 0.0
        %523 = vmatpush1.msra.mxu0 0.0
        %524 = vmatprep.subr.mxu0 0.0
        %525 = vmatpush1.msra.mxu0 0.0
        %526 = vmatprep.subr.mxu0 0.0
        %527 = vmatpush1.msra.mxu0 0.0
        %528 = vmatprep.subr.mxu0 0.0
        %529 = vmatpush1.msra.mxu0 0.0
        %530 = vmatprep.subr.mxu0 0.0
        %531 = vmatpush1.msra.mxu0 0.0
        %532 = vmatprep.subr.mxu0 0.0
        %533 = vmatpush1.msra.mxu0 0.0
        %534 = vmatprep.subr.mxu0 0.0
        %535 = vmatpush1.msra.mxu0 0.0
        %536 = vmatprep.subr.mxu0 0.0
        %537 = vmatpush1.msra.mxu0 0.0
        %538 = vmatprep.subr.mxu0 0.0
        %539 = vmatpush1.msra.mxu0 0.0
        %540 = vmatprep.subr.mxu0 0.0
        %541 = vmatpush1.msra.mxu0 0.0
        %542 = vmatprep.subr.mxu0 0.0
        %543 = vmatpush1.msra.mxu0 0.0
        %544 = vmatprep.subr.mxu0 0.0
        %545 = vmatpush1.msra.mxu0 0.0
        %546 = vmatprep.subr.mxu0 0.0
        %547 = vmatpush1.msra.mxu0 0.0
        %548 = vmatprep.subr.mxu0 0.0
        %549 = vmatpush1.msra.mxu0 0.0
        %550 = vmatprep.subr.mxu0 0.0
        %551 = vmatpush1.msra.mxu0 0.0
        %552 = vmatprep.subr.mxu0 0.0
        %553 = vmatpush1.msra.mxu0 0.0
        %554 = vmatprep.subr.mxu0 0.0
        %555 = vmatpush1.msra.mxu0 0.0
        %556 = vmatprep.subr.mxu0 0.0
        %557 = vmatpush1.msra.mxu0 0.0
        %558 = vmatprep.mubr.f32.mxu0 0.0
        %559 = vmatmul.mubr.f32.gmra.mrb[0].mxu0 %v492
        %v560 = vpop.f32.mrb[0].mxu0
        %v561 = vadd.f32 0.0, %v560
        %v562 = vpop.f32.mrb[0].mxu0
        %563 = vdwg.mxu0
        %564 = vst [vmem:[%s200] sm:$0xff] %v561
        %s565 = sand.u32 %s97, 1
        %s566 = scalar_lea.sflag [#allocation4], %s565
        %s567 = sand.u32 %s97, 1
        %s568 = smul.addr %s567, 8
        %s569 = scalar_lea.vmem [#allocation7], %s568
        // Predicated region
        $region41: #{tpu_custom_call.1} parent=31 // pred_check
          %p570 = pneg %p107
        $region42: #{tpu_custom_call.1} parent=31 // pred_check_branch
          %572 = sbr.rel (%p570) target = $region44
        $region43: #{tpu_custom_call.1} parent=31 // pred_region
          %s574 = ssub.s32 128, 128
          %575 = vsyncadd %s566, %s574
          %s576 = smul.addr %s21, 128
          %s577 = scalar_lea.hbm %s3, %s576
          %s579 = sshll.u32 %s569, 4
          %s580 = int_to_ptr.vmem [resolvable:$true] %s579
          %582 = dma.vmem_to_hbm [thread:$0]  %s580, 128, %s577, %s566
        $region44: #{tpu_custom_call.1} parent=31 // pred_fallthru
          _
      $region32: #{tpu_custom_call.1} parent=5 // pred_fallthru
        _
      %p583 = scmp.le.s32.totalorder 2, %s16
      // Predicated region
      $region45: #{tpu_custom_call.1} parent=5 // pred_check
        %p584 = pneg %p583
      $region46: #{tpu_custom_call.1} parent=5 // pred_check_branch
        %586 = sbr.rel (%p584) target = $region48
      $region47: #{tpu_custom_call.1} parent=5 // pred_region
        %s587 = ssub.s32 %s16, 2
        // Predicated region
        $region49: #{tpu_custom_call.1} parent=47 // pred_check
          %p588 = pneg %p113
        $region50: #{tpu_custom_call.1} parent=47 // pred_check_branch
          %590 = sbr.rel (%p588) target = $region52
        $region51: #{tpu_custom_call.1} parent=47 // pred_region
          %s591 = sand.u32 %s98, 1
          %s592 = scalar_lea.sflag [#allocation4], %s591
          %s593 = sand.u32 %s98, 1
          %s594 = smul.addr %s593, 8
          %s595 = scalar_lea.vmem [#allocation7], %s594
          %596 = dma.done %s592, 128
        $region52: #{tpu_custom_call.1} parent=47 // pred_fallthru
          _
      $region48: #{tpu_custom_call.1} parent=5 // pred_fallthru
        _
    $region6: #{tpu_custom_call.1} parent=1 // loop_footer
      %s20 = sadd.s32 1, %s16
    $region7: #{tpu_custom_call.1} parent=1 // loop_footer_branch
      %15 = sbr.rel target = $region3
    $region8: #{tpu_custom_call.1} parent=1 // loop_exit
      _
    %597 = vsyncpa [#allocation3], 1
    %s598 = scalar_lea.sflag [#allocation3], 1
    %599 = vsyncpa %s598, 1
    %600 = vsyncpa [#allocation6], 1
    %601 = vsyncpa [#allocation4], 1
    %s602 = scalar_lea.sflag [#allocation4], 1
    %603 = vsyncpa %s602, 1

</llo_original>
